<compile_context>
chip_gen: v7x
topology: tpu7x:2x2x1
jax: 0.10.0
libtpu: 0.0.40
codegen_flags: <defaults>
</compile_context>

<pallas_src>
import functools

import jax
import jax.numpy as jnp
from jax.experimental import pallas as pl
from jax.experimental.pallas import tpu as pltpu

# Deterministic "parameters" of the SumLosses instance (the coefficients).
MSE_COEF = 0.7
L1_COEF = 0.3

_LANES = 128


def _tpu_defaults():
    """Generation-aware defaults: (num_parallel, max_tile_rows)."""
    kind = ""
    try:
        kind = (jax.devices()[0].device_kind or "").lower()
    except Exception:
        pass
    if "v7" in kind:
        # v7x: 2 TensorCores/chip, 64 MiB physical / 32 MiB scoped VMEM.
        # 4096 rows f32 -> 2 MiB/block; 2 inputs x 2 buffers = 8 MiB.
        return 2, 4096
    # v5e / v6e: single TensorCore, 128 MiB VMEM -> bigger tiles, no parallel axis.
    return 1, 8192


def _weighted_partial_sum(xs, ys, mse_coef, l1_coef):
    """sum(mse_coef*(x-y)^2 + l1_coef*|x-y|) in f32 (used for fallback + leftovers)."""
    d = xs.astype(jnp.float32) - ys.astype(jnp.float32)
    return jnp.sum(mse_coef * (d * d) + l1_coef * jnp.abs(d))


def _sum_losses_kernel(x_ref, y_ref, o_ref, acc_ref, *, mse_coef, l1_coef, chunk_rows):
    """Streams one (1, tile_rows, 128) tile of x and y and accumulates
    sum(mse_coef*(x-y)^2 + l1_coef*|x-y|) into a resident (8, 128) f32 accumulator."""
    i = pl.program_id(1)

    @pl.when(i == 0)
    def _():
        acc_ref[...] = jnp.zeros_like(acc_ref)

    tile_rows = x_ref.shape[1]

    def _accum(row0, nrows):
        # Static slice (row0/nrows are Python ints): zero-cost ref views.
        xs = x_ref[0, pl.ds(row0, nrows), :].astype(jnp.float32)
        ys = y_ref[0, pl.ds(row0, nrows), :].astype(jnp.float32)
        d = xs - ys
        contrib = mse_coef * (d * d) + l1_coef * jnp.abs(d)
        # (nrows,128)->(nrows//8,8,128) splits only the sublane-major dim, so it is
        # layout-preserving (no VMEM copy); the reduce is cross-vreg VPU adds.
        acc_ref[...] += jnp.sum(contrib.reshape(nrows // 8, 8, _LANES), axis=0)

    # Static chunk loop: bounds elementwise temporaries to ~chunk_rows*128 f32
    # regardless of how large the DMA tile is.
    n_full = tile_rows // chunk_rows
    for c in range(n_full):
        _accum(c * chunk_rows, chunk_rows)
    rem = tile_rows - n_full * chunk_rows
    if rem:
        _accum(n_full * chunk_rows, rem)

    @pl.when(i == pl.num_programs(1) - 1)
    def _():
        # In-kernel final reduce (XLU + VPU are idle in this DMA-bound kernel):
        # shrinks the per-slice writeback from 8 KiB to a single f32.
        lane_sum = jnp.sum(acc_ref[...], axis=1, keepdims=True)   # (8, 1)  XLU
        o_ref[...] = jnp.sum(lane_sum, axis=0, keepdims=True).reshape(1, 1, 1)


def sum_losses(x, y, mse_coef=MSE_COEF, l1_coef=L1_COEF, *,
               num_parallel=None, max_tile_rows=None):
    """Weighted sum of MSELoss (mean) and L1Loss (mean) in one fused Pallas pass."""
    assert x.shape == y.shape, (x.shape, y.shape)
    n_total = int(x.size)
    inv_n = 1.0 / float(n_total)

    dflt_parallel, dflt_tile = _tpu_defaults()
    if num_parallel is None:
        num_parallel = dflt_parallel
    if max_tile_rows is None:
        max_tile_rows = dflt_tile
    max_tile_rows = max(8, (max_tile_rows // 8) * 8)

    xf = x.reshape(-1)
    yf = y.reshape(-1)
    total_rows, lane_rem = divmod(n_total, _LANES)

    # Ragged (N not a multiple of 128) or tiny inputs: a single fused jnp reduction
    # reads each input exactly once -- strictly less HBM traffic than padding or
    # slicing a full-size copy to feed the kernel.
    if lane_rem != 0 or total_rows < 8:
        return (_weighted_partial_sum(xf, yf, mse_coef, l1_coef)
                * jnp.float32(inv_n)).astype(jnp.float32)

    # Zero-copy reshape path (exact factorization, no pad / no slice of the bulk).
    if total_rows % num_parallel != 0 or (total_rows // num_parallel) < 8:
        num_parallel = 1
    rows_per_slice = total_rows // num_parallel

    steps = max(1, -(-rows_per_slice // max_tile_rows))
    tile_rows = (rows_per_slice // steps) // 8 * 8
    if tile_rows < 8:            # only reachable with tiny max_tile_rows overrides
        tile_rows = 8
        steps = rows_per_slice // 8
    used_rows = steps * tile_rows            # rows covered by the kernel, per slice
    chunk_rows = min(tile_rows, 1024)

    x3 = xf.reshape(num_parallel, rows_per_slice, _LANES)
    y3 = yf.reshape(num_parallel, rows_per_slice, _LANES)

    kernel = functools.partial(
        _sum_losses_kernel,
        mse_coef=float(mse_coef), l1_coef=float(l1_coef), chunk_rows=chunk_rows)

    # VMEM budget: 2 inputs x 2 pipeline buffers x tile, bounded elementwise
    # temporaries from the chunk loop, tiny accumulator/output, plus headroom.
    # Safe under v7x's 32 MiB scoped / 64 MiB physical VMEM.
    in_block_bytes = tile_rows * _LANES * x3.dtype.itemsize
    vmem_limit = int(2 * 2 * in_block_bytes
                     + 6 * chunk_rows * _LANES * 4
                     + (8 << 20))

    partials = pl.pallas_call(
        kernel,
        out_shape=jax.ShapeDtypeStruct((num_parallel, 1, 1), jnp.float32),
        grid_spec=pltpu.PrefetchScalarGridSpec(
            num_scalar_prefetch=0,
            grid=(num_parallel, steps),
            in_specs=[
                pl.BlockSpec((1, tile_rows, _LANES), lambda c, i: (c, i, 0)),
                pl.BlockSpec((1, tile_rows, _LANES), lambda c, i: (c, i, 0)),
            ],
            out_specs=pl.BlockSpec((1, 1, 1), lambda c, i: (c, 0, 0)),
            scratch_shapes=[pltpu.VMEM((8, _LANES), jnp.float32)],
        ),
        compiler_params=pltpu.CompilerParams(
            # Outer axis shards across TensorCores on v7x (size 1 elsewhere);
            # inner axis is the sequential accumulation over the stream.
            dimension_semantics=("parallel", "arbitrary"),
            vmem_limit_bytes=vmem_limit,
        ),
    )(x3, y3)

    total = jnp.sum(partials)

    leftover = rows_per_slice - used_rows     # < ~8*steps rows per slice
    if leftover > 0:
        total = total + _weighted_partial_sum(
            x3[:, used_rows:, :], y3[:, used_rows:, :], mse_coef, l1_coef)

    return (total * jnp.float32(inv_n)).astype(jnp.float32)


def sum_losses_ref(x, y, mse_coef=MSE_COEF, l1_coef=L1_COEF):
    d = x.astype(jnp.float32) - y.astype(jnp.float32)
    mse = jnp.mean(d * d)
    mae = jnp.mean(jnp.abs(d))
    return mse_coef * mse + l1_coef * mae


if __name__ == "__main__":
    key = jax.random.PRNGKey(0)
    k1, k2, k3, k4, k5, k6 = jax.random.split(key, 6)

    # NCHW inputs, as the PyTorch module would receive (batch=2, channels=4, 16x16).
    x = jax.random.normal(k1, (2, 4, 16, 16), dtype=jnp.float32)
    y = jax.random.normal(k2, (2, 4, 16, 16), dtype=jnp.float32)
    out = sum_losses(x, y)
    jax.block_until_ready(out)
    assert jnp.allclose(out, sum_losses_ref(x, y), rtol=1e-5, atol=1e-5), out

    # 128-multiple size that is not tile-aligned: exercises the leftover-row path
    # and a forced 2-slice grid (works on single-TC chips too).
    x2 = jax.random.normal(k3, (3, 5, 16, 16), dtype=jnp.float32)
    y2 = jax.random.normal(k4, (3, 5, 16, 16), dtype=jnp.float32)
    out2 = sum_losses(x2, y2, num_parallel=2)
    jax.block_until_ready(out2)
    assert jnp.allclose(out2, sum_losses_ref(x2, y2), rtol=1e-5, atol=1e-5), out2

    # Multi-step accumulation along the "arbitrary" grid axis at a small size.
    out3 = sum_losses(x2, y2, num_parallel=1, max_tile_rows=8)
    jax.block_until_ready(out3)
    assert jnp.allclose(out3, sum_losses_ref(x2, y2), rtol=1e-5, atol=1e-5), out3

    # Ragged size (not a multiple of 128): single-pass fused fallback, no pad copy.
    xr = jax.random.normal(k5, (2, 3, 17, 19), dtype=jnp.float32)
    yr = jax.random.normal(k6, (2, 3, 17, 19), dtype=jnp.float32)
    out_r = sum_losses(xr, yr)
    jax.block_until_ready(out_r)
    assert jnp.allclose(out_r, sum_losses_ref(xr, yr), rtol=1e-5, atol=1e-5), out_r

    print("KERNEL_OK")
</pallas_src>

<mosaic_0001>
module attributes {stable_mosaic.version = 11 : i64} {
  func.func @_sum_losses_kernel(%arg0: i32, %arg1: i32, %arg2: memref<1x16x128xf32, #tpu.memory_space<vmem>>, %arg3: memref<1x16x128xf32, #tpu.memory_space<vmem>>, %arg4: memref<1x1x1xf32, #tpu.memory_space<vmem>>, %arg5: memref<8x128xf32, #tpu.memory_space<vmem>>) attributes {dimension_semantics = [#tpu.dimension_semantics<parallel>, #tpu.dimension_semantics<arbitrary>], iteration_bounds = array<i64: 1, 1>, scalar_prefetch = 0 : i64, scratch_operands = 1 : i64, tpu.core_type = #tpu.core_type<tc>, window_params = [{transform_indices = @transform_0, window_bounds = array<i64: 1, 16, 128>}, {transform_indices = @transform_1, window_bounds = array<i64: 1, 16, 128>}, {transform_indices = @transform_2, window_bounds = array<i64: 1, 1, 1>}]} {
    %c0_i32 = arith.constant 0 : i32
    %0 = arith.cmpi eq, %arg1, %c0_i32 : i32
    %1 = arith.extui %0 : i1 to i32
    %c0_i32_0 = arith.constant 0 : i32
    %2 = arith.cmpi ne, %1, %c0_i32_0 : i32
    scf.if %2 {
      %cst_14 = arith.constant 0.000000e+00 : f32
      %23 = vector.broadcast %cst_14 : f32 to vector<8x128xf32>
      %c0_15 = arith.constant 0 : index
      %c0_16 = arith.constant 0 : index
      %24 = vector.load %arg5[%c0_15, %c0_16] : memref<8x128xf32, #tpu.memory_space<vmem>>, vector<8x128xf32>
      tpu.vector_store %arg5[%c0_15, %c0_16], %23 {strides = array<i32>} : memref<8x128xf32, #tpu.memory_space<vmem>>, vector<8x128xf32>,
    } else {
    }
    %c0 = arith.constant 0 : index
    %c0_1 = arith.constant 0 : index
    %c0_2 = arith.constant 0 : index
    %3 = vector.load %arg2[%c0, %c0_1, %c0_2] : memref<1x16x128xf32, #tpu.memory_space<vmem>>, vector<1x16x128xf32>
    %4 = vector.shape_cast %3 : vector<1x16x128xf32> to vector<16x128xf32>
    %c0_3 = arith.constant 0 : index
    %c0_4 = arith.constant 0 : index
    %c0_5 = arith.constant 0 : index
    %5 = vector.load %arg3[%c0_3, %c0_4, %c0_5] : memref<1x16x128xf32, #tpu.memory_space<vmem>>, vector<1x16x128xf32>
    %6 = vector.shape_cast %5 : vector<1x16x128xf32> to vector<16x128xf32>
    %7 = arith.subf %4, %6 : vector<16x128xf32>
    %8 = arith.mulf %7, %7 : vector<16x128xf32>
    %cst = arith.constant 0.699999988 : f32
    %9 = vector.broadcast %cst : f32 to vector<16x128xf32>
    %10 = arith.mulf %9, %8 : vector<16x128xf32>
    %11 = math.absf %7 : vector<16x128xf32>
    %cst_6 = arith.constant 3.000000e-01 : f32
    %12 = vector.broadcast %cst_6 : f32 to vector<16x128xf32>
    %13 = arith.mulf %12, %11 : vector<16x128xf32>
    %14 = arith.addf %10, %13 : vector<16x128xf32>
    %c0_7 = arith.constant 0 : index
    %c0_8 = arith.constant 0 : index
    %15 = vector.load %arg5[%c0_7, %c0_8] : memref<8x128xf32, #tpu.memory_space<vmem>>, vector<8x128xf32>
    %16 = vector.shape_cast %14 : vector<16x128xf32> to vector<2x8x128xf32>
    %cst_9 = arith.constant dense<0.000000e+00> : vector<8x128xf32>
    %17 = vector.multi_reduction <add>, %16, %cst_9 [0] : vector<2x8x128xf32> to vector<8x128xf32>
    %18 = arith.addf %15, %17 : vector<8x128xf32>
    %c0_10 = arith.constant 0 : index
    %c0_11 = arith.constant 0 : index
    %19 = vector.load %arg5[%c0_10, %c0_11] : memref<8x128xf32, #tpu.memory_space<vmem>>, vector<8x128xf32>
    tpu.vector_store %arg5[%c0_10, %c0_11], %18 {strides = array<i32>} : memref<8x128xf32, #tpu.memory_space<vmem>>, vector<8x128xf32>,
    %c0_i32_12 = arith.constant 0 : i32
    %20 = arith.cmpi eq, %arg1, %c0_i32_12 : i32
    %21 = arith.extui %20 : i1 to i32
    %c0_i32_13 = arith.constant 0 : i32
    %22 = arith.cmpi ne, %21, %c0_i32_13 : i32
    scf.if %22 {
      %c0_14 = arith.constant 0 : index
      %c0_15 = arith.constant 0 : index
      %23 = vector.load %arg5[%c0_14, %c0_15] : memref<8x128xf32, #tpu.memory_space<vmem>>, vector<8x128xf32>
      %cst_16 = arith.constant dense<0.000000e+00> : vector<8xf32>
      %24 = vector.multi_reduction <add>, %23, %cst_16 [1] : vector<8x128xf32> to vector<8xf32>
      %25 = vector.shape_cast %24 : vector<8xf32> to vector<8x1xf32>
      %cst_17 = arith.constant dense<0.000000e+00> : vector<1xf32>
      %26 = vector.multi_reduction <add>, %25, %cst_17 [0] : vector<8x1xf32> to vector<1xf32>
      %27 = vector.shape_cast %26 : vector<1xf32> to vector<1x1xf32>
      %28 = vector.shape_cast %27 : vector<1x1xf32> to vector<1x1x1xf32>
      %c0_18 = arith.constant 0 : index
      %c0_19 = arith.constant 0 : index
      %c0_20 = arith.constant 0 : index
      %29 = vector.load %arg4[%c0_18, %c0_19, %c0_20] : memref<1x1x1xf32, #tpu.memory_space<vmem>>, vector<1x1x1xf32>
      tpu.vector_store %arg4[%c0_18, %c0_19, %c0_20], %28 {strides = array<i32>} : memref<1x1x1xf32, #tpu.memory_space<vmem>>, vector<1x1x1xf32>,
    } else {
    }
    return
  }
  func.func @transform_0(%arg0: i32, %arg1: i32) -> (i32, i32, i32) {
    %c0_i32 = arith.constant 0 : i32
    %c0_i32_0 = arith.constant 0 : i32
    return %arg0, %arg1, %c0_i32 : i32, i32, i32
  }
  func.func @transform_1(%arg0: i32, %arg1: i32) -> (i32, i32, i32) {
    %c0_i32 = arith.constant 0 : i32
    %c0_i32_0 = arith.constant 0 : i32
    return %arg0, %arg1, %c0_i32 : i32, i32, i32
  }
  func.func @transform_2(%arg0: i32, %arg1: i32) -> (i32, i32, i32) {
    %c0_i32 = arith.constant 0 : i32
    %c0_i32_0 = arith.constant 0 : i32
    %c0_i32_1 = arith.constant 0 : i32
    return %arg0, %c0_i32, %c0_i32_0 : i32, i32, i32
  }
}

</mosaic_0001>

<llo_original>
// kernel: tpu_custom_call.1
$region0: #{tpu_custom_call.1}
  #allocation0 [shape = 'u32[]', space=smem, size = 0x4, offset = 0x4, fixed_abs, tag = 'smem constant byte address 0x4 - core index']
  #allocation1 [shape = 'u32[144,128]{1,0:T(1,128)}', space=vmem, size = 0x12000, scoped, tag = 'internal scratch']
  #allocation2 [shape = 'f32[8,128]{1,0:T(8,128)}', space=vmem, size = 0x1000, scoped, tag = 'scratch operand']
  %s0 = inlined_call_operand.hbm [shape: f32[1,16,128], index: 0, kind: input, shape index: {}]
  %s1 = inlined_call_operand.hbm [shape: f32[1,16,128], index: 1, kind: input, shape index: {}]
  %s2 = inlined_call_operand.hbm [shape: f32[1,1,1], index: 2, kind: output, shape index: {}]
  %s3 = sld [smem:[#allocation0]]
  $region34: #{tpu_custom_call.1} parent=0
    _
  %s5 = ssub.s32 1, %s3
  %s6 = scalar_select 0, %s5, %s3
  $region1: #{tpu_custom_call.1} parent=0
    #allocation3 [shape = 'u8[8192]{0}', space=vmem, size = 0x2000, scoped, tag = 'input window, operand 0, single buffered']
    #allocation4 [shape = 's32[1]{0}', space=sflag, size = 0x4, scoped, tag = 'scoped memory for tpu_custom_call.1']
    #allocation5 [shape = 's32[1]{0}', space=sflag, size = 0x4, scoped, tag = 'scoped memory for tpu_custom_call.1']
    #allocation6 [shape = 'u8[8192]{0}', space=vmem, size = 0x2000, scoped, tag = 'input window, operand 1, single buffered']
    #allocation7 [shape = 's32[1]{0}', space=sflag, size = 0x4, scoped, tag = 'scoped memory for tpu_custom_call.1']
    #allocation8 [shape = 'u8[512]{0}', space=vmem, size = 0x400, scoped, tag = 'output window, operand 0, single buffered']
    %7 = vsyncpa [#allocation4], 0
    %8 = vsyncpa [#allocation7], 0
    %9 = vsyncpa [#allocation5], 0
    // Predicated region
    $region2: #{tpu_custom_call.1} parent=1 // pred_check
      _
    $region3: #{tpu_custom_call.1} parent=1 // pred_check_branch
      %11 = sbr.rel (0) target = $region5
    $region4: #{tpu_custom_call.1} parent=1 // pred_region
      %s13 = ssub.s32 256, 256
      %14 = vsyncadd [#allocation4], %s13
      %s15 = sshll.u32 [#allocation3], 4
      %s16 = int_to_ptr.vmem [resolvable:$true] %s15
      %21 = dma.hbm_to_vmem [thread:$0]  %s0, 256, %s16, [#allocation4], 128, 128, 8
    $region5: #{tpu_custom_call.1} parent=1 // pred_fallthru
      _
    // Predicated region
    $region6: #{tpu_custom_call.1} parent=1 // pred_check
      _
    $region7: #{tpu_custom_call.1} parent=1 // pred_check_branch
      %23 = sbr.rel (0) target = $region9
    $region8: #{tpu_custom_call.1} parent=1 // pred_region
      %s25 = ssub.s32 256, 256
      %26 = vsyncadd [#allocation7], %s25
      %s27 = sshll.u32 [#allocation6], 4
      %s28 = int_to_ptr.vmem [resolvable:$true] %s27
      %33 = dma.hbm_to_vmem [thread:$0]  %s1, 256, %s28, [#allocation7], 128, 128, 8
    $region9: #{tpu_custom_call.1} parent=1 // pred_fallthru
      _
    // Predicated region
    $region10: #{tpu_custom_call.1} parent=1 // pred_check
      _
    $region11: #{tpu_custom_call.1} parent=1 // pred_check_branch
      %35 = sbr.rel (0) target = $region13
    $region12: #{tpu_custom_call.1} parent=1 // pred_region
      %36 = dma.done [#allocation4], 256
    $region13: #{tpu_custom_call.1} parent=1 // pred_fallthru
      _
    // Predicated region
    $region14: #{tpu_custom_call.1} parent=1 // pred_check
      _
    $region15: #{tpu_custom_call.1} parent=1 // pred_check_branch
      %38 = sbr.rel (0) target = $region17
    $region16: #{tpu_custom_call.1} parent=1 // pred_region
      %39 = dma.done [#allocation7], 256
    $region17: #{tpu_custom_call.1} parent=1 // pred_fallthru
      _
    %p40 = scmp.eq.s32.totalorder 0, 0
    // Predicated region
    $region18: #{tpu_custom_call.1} parent=1 // pred_check
      %p41 = pneg %p40
    $region19: #{tpu_custom_call.1} parent=1 // pred_check_branch
      %43 = sbr.rel (%p41) target = $region21
    $region20: #{tpu_custom_call.1} parent=1 // pred_region
      %44 = vst [vmem:[#allocation2] sm:$0xff] 0.0
    $region21: #{tpu_custom_call.1} parent=1 // pred_fallthru
      _
    %v45 = vld [vmem:[#allocation3] sm:$0xff]
    %v46 = vld [vmem:[#allocation3 + $0x8] sm:$0xff]
    %v47 = vld [vmem:[#allocation6] sm:$0xff]
    %v48 = vld [vmem:[#allocation6 + $0x8] sm:$0xff]
    %v49 = vsub.f32 %v45, %v47
    %v50 = vsub.f32 %v46, %v48
    %v51 = vmul.f32 %v49, %v49
    %v52 = vmul.f32 %v50, %v50
    %v53 = vmul.f32 %v51, 0.7
    %v54 = vmul.f32 %v52, 0.7
    %v55 = vand.u32 2147483647, %v49
    %v56 = vand.u32 2147483647, %v50
    %v57 = vmul.f32 %v55, 0.3
    %v58 = vmul.f32 %v56, 0.3
    %v59 = vadd.f32 %v53, %v57
    %v60 = vadd.f32 %v54, %v58
    %v61 = vld [vmem:[#allocation2] sm:$0xff]
    %v62 = vadd.f32 %v59, %v60
    %v63 = vadd.f32 %v61, %v62
    %64 = vst [vmem:[#allocation2] sm:$0xff] %v63
    // Predicated region
    $region22: #{tpu_custom_call.1} parent=1 // pred_check
      %p65 = pneg %p40
    $region23: #{tpu_custom_call.1} parent=1 // pred_check_branch
      %67 = sbr.rel (%p65) target = $region25
    $region24: #{tpu_custom_call.1} parent=1 // pred_region
      %v68 = vld [vmem:[#allocation2] sm:$0xff]
      %69 = vadd.xlane.f32.xlu0 %v68
      %v70 = vpop.xlane.xlu0 %69
      %v71 = vrot.slane %v70, 4
      %v72 = vadd.f32 %v70, %v71
      %v73 = vrot.slane %v72, 2
      %v74 = vadd.f32 %v72, %v73
      %v75 = vrot.slane %v74, 1
      %v76 = vadd.f32 %v74, %v75
      %vm77 = vcmask 0
      %78 = vst.msk [vmem:[#allocation8] sm:$0x1] %vm77, %v76
    $region25: #{tpu_custom_call.1} parent=1 // pred_fallthru
      _
    // Predicated region
    $region26: #{tpu_custom_call.1} parent=1 // pred_check
      _
    $region27: #{tpu_custom_call.1} parent=1 // pred_check_branch
      %80 = sbr.rel (0) target = $region29
    $region28: #{tpu_custom_call.1} parent=1 // pred_region
      %s82 = ssub.s32 16, 16
      %83 = vsyncadd [#allocation5], %s82
      %s85 = sshll.u32 [#allocation8], 4
      %s86 = int_to_ptr.vmem [resolvable:$true] %s85
      %88 = dma.vmem_to_hbm [thread:$0]  %s86, 16, %s2, [#allocation5]
    $region29: #{tpu_custom_call.1} parent=1 // pred_fallthru
      _
    // Predicated region
    $region30: #{tpu_custom_call.1} parent=1 // pred_check
      _
    $region31: #{tpu_custom_call.1} parent=1 // pred_check_branch
      %90 = sbr.rel (0) target = $region33
    $region32: #{tpu_custom_call.1} parent=1 // pred_region
      %91 = dma.done [#allocation5], 16
    $region33: #{tpu_custom_call.1} parent=1 // pred_fallthru
      _
    %92 = vsyncpa [#allocation4], 1
    %93 = vsyncpa [#allocation7], 1
    %94 = vsyncpa [#allocation5], 1

</llo_original>
